<compile_context>
chip_gen: v6e
topology: v6e:2x2x1
jax: 0.10.0
libtpu: 0.0.40
codegen_flags: <defaults>
</compile_context>

<pallas_src>
from functools import partial

import jax
import jax.numpy as jnp
from jax.experimental import pallas as pl
from jax.experimental.pallas import tpu as pltpu

_HP = jax.lax.Precision.HIGHEST   # used for host-side folds & the reference


def _round_up(n, m):
    return (n + m - 1) // m * m


def _align16(n):                   # 16-row alignment = bf16 sublane tile height
    return _round_up(n, 16)


def _slab_layout(D, H):
    """Static row/lane offsets of the packed weight+bias slab."""
    DH, D2H = D * H, 2 * D * H
    ra = 0                              # W_A : (D,   DH)  fused embed∘encL1 (mask folded)
    rb = _align16(ra + D)               # W_B : (DH,  DH)  block-diag encL2
    rc = _align16(rb + DH)              # W_C : (DH, 2DH)  fused encL3∘decL1, block-diag
    rd = _align16(rc + DH)              # W_D : (2DH, DH)  block-diag decL2
    re = _align16(rd + D2H)             # W_E : (DH,  D)   block-diag decL3
    rbias = _align16(re + DH)           # 5 bias rows: b_A, b_B, b_C, b_D, b_E
    rows = _align16(rbias + 5)
    lanes = max(128, _round_up(D2H, 128))
    return ra, rb, rc, rd, re, rbias, rows, lanes


# ----------------------------- Pallas kernel --------------------------------
def share_mlp_kernel(x_ref, slab_ref, out_ref, *, D, H, S):
    """Fused 5-matmul forward for one batch tile.

    x_ref    : (TM, S, D)   f32 input tile (full sequence; only step S-1 used)
    slab_ref : (rows, lanes) packed weights + biases (f32 or bf16)
    out_ref  : (TM, D)      f32 output tile
    """
    DH, D2H = D * H, 2 * D * H
    ra, rb, rc, rd, re, rbias, _, _ = _slab_layout(D, H)
    wdt = slab_ref.dtype                          # matmul / activation dtype

    def layer(a, w, b):
        acc = jnp.dot(a, w, preferred_element_type=jnp.float32)   # f32 accumulate
        return jnp.maximum(acc.astype(wdt) + b, 0)                # bias+ReLU in wdt

    x = x_ref[:, S - 1, :].astype(wdt)                            # (TM, D) last step
    # fused embedding∘encL1 (mask folded into the weight), then ReLU
    h = layer(x, slab_ref[ra:ra + D, :DH],    slab_ref[rbias + 0:rbias + 1, :DH])
    # encoder L2 + ReLU
    h = layer(h, slab_ref[rb:rb + DH, :DH],   slab_ref[rbias + 1:rbias + 2, :DH])
    # fused encL3∘decL1 + ReLU
    h = layer(h, slab_ref[rc:rc + DH, :D2H],  slab_ref[rbias + 2:rbias + 3, :D2H])
    # decoder L2 + ReLU
    h = layer(h, slab_ref[rd:rd + D2H, :DH],  slab_ref[rbias + 3:rbias + 4, :DH])
    # decoder L3 -> (TM, D) directly, single store
    o = jnp.dot(h, slab_ref[re:re + DH, :D], preferred_element_type=jnp.float32)
    out_ref[...] = o + slab_ref[rbias + 4:rbias + 5, :D].astype(jnp.float32)


# ----------------------- host-side parameter repacking ----------------------
def _block_diag(w_stack):
    """(D, fin, fout) per-head weights -> (D*fin, D*fout) block-diagonal."""
    D, fin, fout = w_stack.shape
    out = jnp.zeros((D * fin, D * fout), w_stack.dtype)
    for i in range(D):
        out = out.at[i * fin:(i + 1) * fin, i * fout:(i + 1) * fout].set(w_stack[i])
    return out


def pack_params(params, weight_dtype=jnp.bfloat16):
    """Fold affine-adjacent layer pairs (f32, HIGHEST precision) and pack all
    weights + biases into one lane-dense slab; cast to weight_dtype last."""
    (mask, we, be, w1, b1, w2, b2, w3, b3,
     wd1, bd1, wd2, bd2, wd3, bd3) = params
    D, H = mask.shape[0], we.shape[1]
    DH, D2H = D * H, 2 * D * H
    ra, rb, rc, rd, re, rbias, rows, lanes = _slab_layout(D, H)

    # fold mask + embedding into encoder Linear1:
    #   W_A[i, d*H+k] = mask[d,i] * sum_h We[i,h] * w1[d,h,k]
    wA = jnp.einsum('di,ih,dhk->idk', mask, we, w1, precision=_HP).reshape(D, DH)
    bA = (jnp.einsum('oh,dhk->dk', be, w1, precision=_HP) + b1[:, 0, :]).reshape(DH)
    # encoder Linear2 (block-diagonal)
    wB = _block_diag(w2)
    bB = b2[:, 0, :].reshape(DH)
    # fold encoder Linear3 into decoder Linear1 (no ReLU between them)
    wC = _block_diag(jnp.einsum('dhk,dkm->dhm', w3, wd1, precision=_HP))
    bC = (jnp.einsum('doh,dhm->dom', b3, wd1, precision=_HP) + bd1)[:, 0, :].reshape(D2H)
    # decoder Linear2 / Linear3 (block-diagonal)
    wD = _block_diag(wd2)
    bD = bd2[:, 0, :].reshape(DH)
    wE = _block_diag(wd3)
    bE = bd3[:, 0, :].reshape(D)

    slab = jnp.zeros((rows, lanes), jnp.float32)
    slab = slab.at[ra:ra + D,   :DH].set(wA)
    slab = slab.at[rb:rb + DH,  :DH].set(wB)
    slab = slab.at[rc:rc + DH,  :D2H].set(wC)
    slab = slab.at[rd:rd + D2H, :DH].set(wD)
    slab = slab.at[re:re + DH,  :D].set(wE)
    slab = slab.at[rbias + 0, :DH].set(bA)
    slab = slab.at[rbias + 1, :DH].set(bB)
    slab = slab.at[rbias + 2, :D2H].set(bC)
    slab = slab.at[rbias + 3, :DH].set(bD)
    slab = slab.at[rbias + 4, :D].set(bE)
    return slab.astype(weight_dtype)


# --------------------------------- wrapper -----------------------------------
def share_mlp_forward(x, slab, hidden_size):
    """x: (batch, seq, input_size) -> (batch, input_size)."""
    B, S, D = x.shape
    H = hidden_size
    DH, D2H = D * H, 2 * D * H

    # batch tiling: at least 8 rows (full sublanes); 128-wide tiles for big batch
    TM = min(128, _round_up(max(B, 1), 8))
    B_pad = _round_up(B, TM)
    x_pad = x.astype(jnp.float32)
    if B_pad != B:
        x_pad = jnp.pad(x_pad, ((0, B_pad - B), (0, 0), (0, 0)))
    n_tiles = B_pad // TM

    flops = 2 * B_pad * (D * DH + DH * DH + DH * D2H + D2H * DH + DH * D)
    bytes_accessed = int(x_pad.size * 4 + slab.size * slab.dtype.itemsize
                         + B_pad * D * 4)

    out = pl.pallas_call(
        partial(share_mlp_kernel, D=D, H=H, S=S),
        grid=(n_tiles,),
        out_shape=jax.ShapeDtypeStruct((B_pad, D), jnp.float32),
        in_specs=[
            # x: batch-tiled; full sequence so the last step is picked in-kernel
            pl.BlockSpec((TM, S, D), lambda i: (i, 0, 0)),
            # weight slab: constant index_map -> DMA'd once, VMEM-resident
            pl.BlockSpec(slab.shape, lambda i: (0, 0)),
        ],
        out_specs=pl.BlockSpec((TM, D), lambda i: (i, 0)),
        compiler_params=pltpu.CompilerParams(
            dimension_semantics=("parallel",)),
        cost_estimate=pl.CostEstimate(flops=flops, transcendentals=0,
                                      bytes_accessed=bytes_accessed),
    )(x_pad, slab)
    return out[:B]


# ---------------- pure-JAX reference (mirrors the torch module) -------------
def share_mlp_reference(x, params):
    (mask, we, be, w1, b1, w2, b2, w3, b3,
     wd1, bd1, wd2, bd2, wd3, bd3) = params

    def dot(a, b):
        return jnp.dot(a, b, precision=_HP)

    x_last = x[:, -1, :].astype(jnp.float32)
    outs = []
    for i in range(mask.shape[0]):
        mx = x_last * mask[i]
        h = dot(mx, we) + be
        h = jax.nn.relu(dot(h, w1[i]) + b1[i])
        h = jax.nn.relu(dot(h, w2[i]) + b2[i])
        h = dot(h, w3[i]) + b3[i]
        d = jax.nn.relu(dot(h, wd1[i]) + bd1[i])
        d = jax.nn.relu(dot(d, wd2[i]) + bd2[i])
        d = dot(d, wd3[i]) + bd3[i]
        outs.append(d)
    return jnp.concatenate(outs, axis=1)


# ---------------- deterministic parameter construction ----------------------
def make_params(key, input_size, hidden_size):
    D, H = input_size, hidden_size

    def linear(k, fan_in, fan_out):
        # torch nn.Linear default init: U(-1/sqrt(fan_in), 1/sqrt(fan_in)),
        # stored as (fan_in, fan_out) so y = x @ W + b.
        kw, kb = jax.random.split(k)
        bound = 1.0 / jnp.sqrt(fan_in)
        w = jax.random.uniform(kw, (fan_in, fan_out), jnp.float32, -bound, bound)
        b = jax.random.uniform(kb, (1, fan_out), jnp.float32, -bound, bound)
        return w, b

    keys = jax.random.split(key, 8)
    # mask: random binary, diagonal forced to 1 (as in __init__)
    mask = (jax.random.uniform(keys[0], (D, D)) < 0.5).astype(jnp.float32)
    mask = mask.at[jnp.arange(D), jnp.arange(D)].set(1.0)

    we, be = linear(keys[1], D, H)

    def stack_linear(k, fan_in, fan_out):
        ws, bs = [], []
        for kk in jax.random.split(k, D):
            w, b = linear(kk, fan_in, fan_out)
            ws.append(w)
            bs.append(b[None])                    # (1, 1, fan_out)
        return jnp.stack(ws, 0), jnp.concatenate(bs, 0)

    w1, b1 = stack_linear(keys[2], H, H)
    w2, b2 = stack_linear(keys[3], H, H)
    w3, b3 = stack_linear(keys[4], H, H)
    wd1, bd1 = stack_linear(keys[5], H, 2 * H)
    wd2, bd2 = stack_linear(keys[6], 2 * H, H)
    wd3, bd3 = stack_linear(keys[7], H, 1)

    return (mask, we, be, w1, b1, w2, b2, w3, b3,
            wd1, bd1, wd2, bd2, wd3, bd3)


if __name__ == "__main__":
    batch, seq, input_size, hidden_size = 2, 8, 4, 32

    key = jax.random.PRNGKey(0)
    kx, kp = jax.random.split(key)
    x = jax.random.normal(kx, (batch, seq, input_size), jnp.float32)
    params = make_params(kp, input_size, hidden_size)
    ref = share_mlp_reference(x, params)

    # default / fast path: bf16 weights & activations (f32 accumulation)
    slab_bf16 = pack_params(params, weight_dtype=jnp.bfloat16)
    out_bf16 = jax.block_until_ready(share_mlp_forward(x, slab_bf16, hidden_size))
    assert out_bf16.shape == (batch, input_size)
    assert jnp.allclose(out_bf16, ref, atol=1e-1, rtol=1e-1), (out_bf16, ref)

    # f32-weight path (tighter check; tolerance covers TPU default matmul precision)
    slab_f32 = pack_params(params, weight_dtype=jnp.float32)
    out_f32 = jax.block_until_ready(share_mlp_forward(x, slab_f32, hidden_size))
    assert out_f32.shape == (batch, input_size)
    assert jnp.allclose(out_f32, ref, atol=1e-2, rtol=1e-2), (out_f32, ref)

    print("KERNEL_OK")
</pallas_src>

<mosaic_0001>
module attributes {stable_mosaic.version = 11 : i64} {
  func.func @share_mlp_kernel(%arg0: i32, %arg1: memref<8x8x4xf32, #tpu.memory_space<vmem>>, %arg2: memref<672x256xbf16, #tpu.memory_space<vmem>>, %arg3: memref<8x4xf32, #tpu.memory_space<vmem>>) attributes {dimension_semantics = [#tpu.dimension_semantics<parallel>], iteration_bounds = array<i64: 1>, scalar_prefetch = 0 : i64, scratch_operands = 0 : i64, tpu.core_type = #tpu.core_type<tc>, window_params = [{transform_indices = @transform_0, window_bounds = array<i64: 8, 8, 4>}, {pipeline_mode = #tpu.pipeline_mode<synchronous>, transform_indices = @transform_1, window_bounds = array<i64: 672, 256>}, {transform_indices = @transform_2, window_bounds = array<i64: 8, 4>}]} {
    %c0 = arith.constant 0 : index
    %c7 = arith.constant 7 : index
    %c0_0 = arith.constant 0 : index
    %0 = vector.load %arg1[%c0, %c7, %c0_0] : memref<8x8x4xf32, #tpu.memory_space<vmem>>, vector<8x1x4xf32>
    %1 = vector.shape_cast %0 : vector<8x1x4xf32> to vector<8x4xf32>
    %2 = arith.truncf %1 : vector<8x4xf32> to vector<8x4xbf16>
    %c0_1 = arith.constant 0 : index
    %c0_2 = arith.constant 0 : index
    %3 = vector.load %arg2[%c0_1, %c0_2] : memref<672x256xbf16, #tpu.memory_space<vmem>>, vector<4x128xbf16>
    %c656 = arith.constant 656 : index
    %c0_3 = arith.constant 0 : index
    %4 = vector.load %arg2[%c656, %c0_3] : memref<672x256xbf16, #tpu.memory_space<vmem>>, vector<1x128xbf16>
    %cst = arith.constant dense<0.000000e+00> : vector<8x128xf32>
    %5 = tpu.matmul %2, %3, %cst {dimension_numbers = #tpu.dot_dimension_numbers<[1], [0], [0], [1], [0, 0, 1, 1], [], []>} : vector<8x4xbf16>, vector<4x128xbf16>, vector<8x128xf32> -> vector<8x128xf32>
    %6 = arith.truncf %5 : vector<8x128xf32> to vector<8x128xbf16>
    %7 = vector.broadcast %4 : vector<1x128xbf16> to vector<8x128xbf16>
    %8 = arith.addf %6, %7 : vector<8x128xbf16>
    %cst_4 = arith.constant 0.000000e+00 : bf16
    %9 = vector.broadcast %cst_4 : bf16 to vector<8x128xbf16>
    %10 = arith.maximumf %8, %9 : vector<8x128xbf16>
    %c16 = arith.constant 16 : index
    %c0_5 = arith.constant 0 : index
    %11 = vector.load %arg2[%c16, %c0_5] : memref<672x256xbf16, #tpu.memory_space<vmem>>, vector<128x128xbf16>
    %c657 = arith.constant 657 : index
    %c0_6 = arith.constant 0 : index
    %12 = vector.load %arg2[%c657, %c0_6] : memref<672x256xbf16, #tpu.memory_space<vmem>>, vector<1x128xbf16>
    %cst_7 = arith.constant dense<0.000000e+00> : vector<8x128xf32>
    %13 = tpu.matmul %10, %11, %cst_7 {dimension_numbers = #tpu.dot_dimension_numbers<[1], [0], [0], [1], [0, 0, 1, 1], [], []>} : vector<8x128xbf16>, vector<128x128xbf16>, vector<8x128xf32> -> vector<8x128xf32>
    %14 = arith.truncf %13 : vector<8x128xf32> to vector<8x128xbf16>
    %15 = vector.broadcast %12 : vector<1x128xbf16> to vector<8x128xbf16>
    %16 = arith.addf %14, %15 : vector<8x128xbf16>
    %cst_8 = arith.constant 0.000000e+00 : bf16
    %17 = vector.broadcast %cst_8 : bf16 to vector<8x128xbf16>
    %18 = arith.maximumf %16, %17 : vector<8x128xbf16>
    %c144 = arith.constant 144 : index
    %c0_9 = arith.constant 0 : index
    %19 = vector.load %arg2[%c144, %c0_9] : memref<672x256xbf16, #tpu.memory_space<vmem>>, vector<128x256xbf16>
    %c658 = arith.constant 658 : index
    %c0_10 = arith.constant 0 : index
    %20 = vector.load %arg2[%c658, %c0_10] : memref<672x256xbf16, #tpu.memory_space<vmem>>, vector<1x256xbf16>
    %cst_11 = arith.constant dense<0.000000e+00> : vector<8x256xf32>
    %21 = tpu.matmul %18, %19, %cst_11 {dimension_numbers = #tpu.dot_dimension_numbers<[1], [0], [0], [1], [0, 0, 1, 1], [], []>} : vector<8x128xbf16>, vector<128x256xbf16>, vector<8x256xf32> -> vector<8x256xf32>
    %22 = arith.truncf %21 : vector<8x256xf32> to vector<8x256xbf16>
    %23 = vector.broadcast %20 : vector<1x256xbf16> to vector<8x256xbf16>
    %24 = arith.addf %22, %23 : vector<8x256xbf16>
    %cst_12 = arith.constant 0.000000e+00 : bf16
    %25 = vector.broadcast %cst_12 : bf16 to vector<8x256xbf16>
    %26 = arith.maximumf %24, %25 : vector<8x256xbf16>
    %c272 = arith.constant 272 : index
    %c0_13 = arith.constant 0 : index
    %27 = vector.load %arg2[%c272, %c0_13] : memref<672x256xbf16, #tpu.memory_space<vmem>>, vector<256x128xbf16>
    %c659 = arith.constant 659 : index
    %c0_14 = arith.constant 0 : index
    %28 = vector.load %arg2[%c659, %c0_14] : memref<672x256xbf16, #tpu.memory_space<vmem>>, vector<1x128xbf16>
    %cst_15 = arith.constant dense<0.000000e+00> : vector<8x128xf32>
    %29 = tpu.matmul %26, %27, %cst_15 {dimension_numbers = #tpu.dot_dimension_numbers<[1], [0], [0], [1], [0, 0, 1, 1], [], []>} : vector<8x256xbf16>, vector<256x128xbf16>, vector<8x128xf32> -> vector<8x128xf32>
    %30 = arith.truncf %29 : vector<8x128xf32> to vector<8x128xbf16>
    %31 = vector.broadcast %28 : vector<1x128xbf16> to vector<8x128xbf16>
    %32 = arith.addf %30, %31 : vector<8x128xbf16>
    %cst_16 = arith.constant 0.000000e+00 : bf16
    %33 = vector.broadcast %cst_16 : bf16 to vector<8x128xbf16>
    %34 = arith.maximumf %32, %33 : vector<8x128xbf16>
    %c528 = arith.constant 528 : index
    %c0_17 = arith.constant 0 : index
    %35 = vector.load %arg2[%c528, %c0_17] : memref<672x256xbf16, #tpu.memory_space<vmem>>, vector<128x4xbf16>
    %cst_18 = arith.constant dense<0.000000e+00> : vector<8x4xf32>
    %36 = tpu.matmul %34, %35, %cst_18 {dimension_numbers = #tpu.dot_dimension_numbers<[1], [0], [0], [1], [0, 0, 1, 1], [], []>} : vector<8x128xbf16>, vector<128x4xbf16>, vector<8x4xf32> -> vector<8x4xf32>
    %c660 = arith.constant 660 : index
    %c0_19 = arith.constant 0 : index
    %37 = vector.load %arg2[%c660, %c0_19] : memref<672x256xbf16, #tpu.memory_space<vmem>>, vector<1x4xbf16>
    %38 = arith.extf %37 : vector<1x4xbf16> to vector<1x4xf32>
    %39 = vector.broadcast %38 : vector<1x4xf32> to vector<8x4xf32>
    %40 = arith.addf %36, %39 : vector<8x4xf32>
    %c0_20 = arith.constant 0 : index
    %c0_21 = arith.constant 0 : index
    %41 = vector.load %arg3[%c0_20, %c0_21] : memref<8x4xf32, #tpu.memory_space<vmem>>, vector<8x4xf32>
    tpu.vector_store %arg3[%c0_20, %c0_21], %40 {strides = array<i32>} : memref<8x4xf32, #tpu.memory_space<vmem>>, vector<8x4xf32>,
    return
  }
  func.func @transform_0(%arg0: i32) -> (i32, i32, i32) {
    %c0_i32 = arith.constant 0 : i32
    %c0_i32_0 = arith.constant 0 : i32
    %c0_i32_1 = arith.constant 0 : i32
    return %arg0, %c0_i32, %c0_i32_0 : i32, i32, i32
  }
  func.func @transform_1(%arg0: i32) -> (i32, i32) {
    %c0_i32 = arith.constant 0 : i32
    %c0_i32_0 = arith.constant 0 : i32
    %c0_i32_1 = arith.constant 0 : i32
    return %c0_i32, %c0_i32_0 : i32, i32
  }
  func.func @transform_2(%arg0: i32) -> (i32, i32) {
    %c0_i32 = arith.constant 0 : i32
    %c0_i32_0 = arith.constant 0 : i32
    return %arg0, %c0_i32 : i32, i32
  }
}

</mosaic_0001>

<llo_original>
// kernel: tpu_custom_call.1
$region0: #{tpu_custom_call.1}
  #allocation0 [shape = 'u32[]', space=smem, size = 0x4, offset = 0x4, fixed_abs, tag = 'smem constant byte address 0x4 - core index']
  #allocation1 [shape = 'u32[144,128]{1,0:T(1,128)}', space=vmem, size = 0x12000, scoped, tag = 'internal scratch']
  %s0 = inlined_call_operand.vmem [shape: f32[8,8,4], index: 0, kind: input, shape index: {}]
  %s1 = inlined_call_operand.hbm [shape: bf16[672,256], index: 1, kind: input, shape index: {}]
  %s2 = inlined_call_operand.vmem [shape: f32[8,4], index: 2, kind: output, shape index: {}]
  %s3 = sld [smem:[#allocation0]]
  $region22: #{tpu_custom_call.1} parent=0
    _
  %s5 = ssub.s32 1, %s3
  %s6 = scalar_select 0, %s5, %s3
  $region1: #{tpu_custom_call.1} parent=0
    #allocation2 [shape = 'u8[344064]{0}', space=vmem, size = 0x54000, scoped, tag = 'input window, operand 1, single buffered']
    #allocation3 [shape = 's32[1]{0}', space=sflag, size = 0x4, scoped, tag = 'scoped memory for tpu_custom_call.1']
    %7 = vsyncpa [#allocation3], 0
    // Predicated region
    $region2: #{tpu_custom_call.1} parent=1 // pred_check
      _
    $region3: #{tpu_custom_call.1} parent=1 // pred_check_branch
      %9 = sbr.rel (0) target = $region5
    $region4: #{tpu_custom_call.1} parent=1 // pred_region
      _
    $region5: #{tpu_custom_call.1} parent=1 // pred_fallthru
      _
    // Predicated region
    $region6: #{tpu_custom_call.1} parent=1 // pred_check
      _
    $region7: #{tpu_custom_call.1} parent=1 // pred_check_branch
      %11 = sbr.rel (0) target = $region9
    $region8: #{tpu_custom_call.1} parent=1 // pred_region
      %s13 = ssub.s32 10752, 10752
      %14 = vsyncadd [#allocation3], %s13
      %s15 = sshll.u32 [#allocation2], 4
      %s16 = int_to_ptr.vmem [resolvable:$true] %s15
      %21 = dma.hbm_to_vmem [thread:$0]  %s1, 10752, %s16, [#allocation3], 128, 128, 8
    $region9: #{tpu_custom_call.1} parent=1 // pred_fallthru
      _
    // Predicated region
    $region10: #{tpu_custom_call.1} parent=1 // pred_check
      _
    $region11: #{tpu_custom_call.1} parent=1 // pred_check_branch
      %23 = sbr.rel (0) target = $region13
    $region12: #{tpu_custom_call.1} parent=1 // pred_region
      %24 = dma.done [#allocation3], 10752
    $region13: #{tpu_custom_call.1} parent=1 // pred_fallthru
      _
    %v26 = vld [vmem:[%s0 + $0x7] sm:$0x1]
    %v27 = vld [vmem:[%s0 + $0xf] sm:$0x1]
    %v28 = vld [vmem:[%s0 + $0x17] sm:$0x1]
    %v29 = vld [vmem:[%s0 + $0x1f] sm:$0x1]
    %v30 = vld [vmem:[%s0 + $0x27] sm:$0x1]
    %v31 = vld [vmem:[%s0 + $0x2f] sm:$0x1]
    %v32 = vld [vmem:[%s0 + $0x37] sm:$0x1]
    %v33 = vld [vmem:[%s0 + $0x3f] sm:$0x1]
    %v34 = vpack.c.bf16 %v26, %v26
    %v35 = vpack.c.bf16 %v27, %v27
    %v36 = vpack.c.bf16 %v28, %v28
    %v37 = vpack.c.bf16 %v29, %v29
    %v38 = vpack.c.bf16 %v30, %v30
    %v39 = vpack.c.bf16 %v31, %v31
    %v40 = vpack.c.bf16 %v32, %v32
    %v41 = vpack.c.bf16 %v33, %v33
    %v42 = vld [vmem:[#allocation2] sm:$0x3]
    %v43 = vld [vmem:[#allocation2 + $0x290] sm:$0x1]
    %v52 = vunpack.c.l.b16 %v34
    %v53 = vunpack.c.l.b16 %v35
    %v54 = vunpack.c.l.b16 %v36
    %v55 = vunpack.c.l.b16 %v37
    %v56 = vunpack.c.l.b16 %v38
    %v57 = vunpack.c.l.b16 %v39
    %v58 = vunpack.c.l.b16 %v40
    %v59 = vunpack.c.l.b16 %v41
    %v60 = vrot.slane %v53, 7
    %vm61 = vcmask 1041409
    %v62 = vsel %vm61, %v60, %v52
    %v63 = vrot.slane %v54, 6
    %vm64 = vcmask 1042434
    %v65 = vsel %vm64, %v63, %v62
    %v66 = vrot.slane %v55, 5
    %vm67 = vcmask 1043459
    %v68 = vsel %vm67, %v66, %v65
    %v69 = vrot.slane %v56, 4
    %vm70 = vcmask 1044484
    %v71 = vsel %vm70, %v69, %v68
    %v72 = vrot.slane %v57, 3
    %vm73 = vcmask 1045509
    %v74 = vsel %vm73, %v72, %v71
    %v75 = vrot.slane %v58, 2
    %vm76 = vcmask 1046534
    %v77 = vsel %vm76, %v75, %v74
    %v78 = vrot.slane %v59, 1
    %vm79 = vcmask 1047559
    %v80 = vsel %vm79, %v78, %v77
    %v81 = vpack.c.b16 %v80, %v80
    %vm82 = vcmask 31744
    %v84 = vsel %vm82, %v81, 0
    %vm86 = vcmask 1041408
    %v88 = vsel %vm86, %v42, 0
    %90 = vmatprep.subr.bf16.mxu0 0
    %91 = vmatpush1.bf16.msra.mxu0 0
    %92 = vmatprep.subr.bf16.mxu0 0
    %93 = vmatpush1.bf16.msra.mxu0 0
    %94 = vmatprep.subr.bf16.mxu0 0
    %95 = vmatpush1.bf16.msra.mxu0 0
    %96 = vmatprep.subr.bf16.mxu0 0
    %97 = vmatpush1.bf16.msra.mxu0 0
    %98 = vmatprep.subr.bf16.mxu0 0
    %99 = vmatpush1.bf16.msra.mxu0 0
    %100 = vmatprep.subr.bf16.mxu0 0
    %101 = vmatpush1.bf16.msra.mxu0 0
    %102 = vmatprep.subr.bf16.mxu0 0
    %103 = vmatpush1.bf16.msra.mxu0 0
    %104 = vmatprep.subr.bf16.mxu0 0
    %105 = vmatpush1.bf16.msra.mxu0 %v88
    %106 = vmatprep.subr.bf16.mxu0 0
    %107 = vmatpush2.bf16.msra.mxu0 0
    %108 = vmatprep.subr.bf16.mxu0 0
    %109 = vmatpush2.bf16.msra.mxu0 0
    %110 = vmatprep.subr.bf16.mxu0 0
    %111 = vmatpush2.bf16.msra.mxu0 0
    %112 = vmatprep.subr.bf16.mxu0 0
    %113 = vmatpush2.bf16.msra.mxu0 0
    %114 = vmatprep.subr.bf16.mxu0 0
    %115 = vmatpush2.bf16.msra.mxu0 0
    %116 = vmatprep.subr.bf16.mxu0 0
    %117 = vmatpush2.bf16.msra.mxu0 0
    %118 = vmatprep.subr.bf16.mxu0 0
    %119 = vmatpush2.bf16.msra.mxu0 0
    %120 = vmatprep.subr.bf16.mxu0 0
    %121 = vmatpush2.bf16.msra.mxu0 0
    %122 = vmatprep.mubr.bf16.mxu0 0
    %123 = vmatmul.mubr.bf16.gmra.mxu0 %v84
    %v124 = vpop.f32.mrf.mxu0
    %v125 = vadd.f32 0.0, %v124
    %v126 = vpop.f32.mrf.mxu0
    %v127 = vpop.f32.mrf.mxu0
    %v128 = vpop.f32.mrf.mxu0
    %129 = vdwg.mxu0
    %v130 = vpack.c.bf16 %v125, %v125
    %v132 = vpack.i.b16 %v43, %v43
    %v134 = vlaneseq
    %v135 = vshrl.u32 %v134, 7
    %v136 = vsub.s32 0, %v135
    %v137 = vrot.slane %v132, %v136
    %v138 = vadd.bf16 %v130, %v137
    %v139 = vmax.bf16 %v138, 0
    %v140 = vld [vmem:[#allocation2 + $0x10] sm:$0xf]
    %v141 = vld [vmem:[#allocation2 + $0x18] sm:$0xf]
    %v142 = vld [vmem:[#allocation2 + $0x20] sm:$0xf]
    %v143 = vld [vmem:[#allocation2 + $0x28] sm:$0xf]
    %v144 = vld [vmem:[#allocation2 + $0x30] sm:$0xf]
    %v145 = vld [vmem:[#allocation2 + $0x38] sm:$0xf]
    %v146 = vld [vmem:[#allocation2 + $0x40] sm:$0xf]
    %v147 = vld [vmem:[#allocation2 + $0x48] sm:$0xf]
    %v148 = vld [vmem:[#allocation2 + $0x50] sm:$0xf]
    %v149 = vld [vmem:[#allocation2 + $0x58] sm:$0xf]
    %v150 = vld [vmem:[#allocation2 + $0x60] sm:$0xf]
    %v151 = vld [vmem:[#allocation2 + $0x68] sm:$0xf]
    %v152 = vld [vmem:[#allocation2 + $0x70] sm:$0xf]
    %v153 = vld [vmem:[#allocation2 + $0x78] sm:$0xf]
    %v154 = vld [vmem:[#allocation2 + $0x80] sm:$0xf]
    %v155 = vld [vmem:[#allocation2 + $0x88] sm:$0xf]
    %v172 = vunpack.c.l.b16 %v140
    %v173 = vunpack.c.l.b16 %v141
    %v174 = vunpack.c.l.b16 %v142
    %v175 = vunpack.c.l.b16 %v143
    %v176 = vunpack.c.l.b16 %v144
    %v177 = vunpack.c.l.b16 %v145
    %v178 = vunpack.c.l.b16 %v146
    %v179 = vunpack.c.l.b16 %v147
    %v180 = vunpack.c.l.b16 %v148
    %v181 = vunpack.c.l.b16 %v149
    %v182 = vunpack.c.l.b16 %v150
    %v183 = vunpack.c.l.b16 %v151
    %v184 = vunpack.c.l.b16 %v152
    %v185 = vunpack.c.l.b16 %v153
    %v186 = vunpack.c.l.b16 %v154
    %v187 = vunpack.c.l.b16 %v155
    %v188 = vpack.c.b16 %v173, %v172
    %v189 = vpack.c.b16 %v175, %v174
    %v190 = vpack.c.b16 %v177, %v176
    %v191 = vpack.c.b16 %v179, %v178
    %v192 = vpack.c.b16 %v181, %v180
    %v193 = vpack.c.b16 %v183, %v182
    %v194 = vpack.c.b16 %v185, %v184
    %v195 = vpack.c.b16 %v187, %v186
    %204 = vmatprep.subr.bf16.mxu0 0
    %205 = vmatpush1.bf16.msra.mxu0 %v195
    %206 = vmatprep.subr.bf16.mxu0 0
    %207 = vmatpush1.bf16.msra.mxu0 %v194
    %208 = vmatprep.subr.bf16.mxu0 0
    %209 = vmatpush1.bf16.msra.mxu0 %v193
    %210 = vmatprep.subr.bf16.mxu0 0
    %211 = vmatpush1.bf16.msra.mxu0 %v192
    %212 = vmatprep.subr.bf16.mxu0 0
    %213 = vmatpush1.bf16.msra.mxu0 %v191
    %214 = vmatprep.subr.bf16.mxu0 0
    %215 = vmatpush1.bf16.msra.mxu0 %v190
    %216 = vmatprep.subr.bf16.mxu0 0
    %217 = vmatpush1.bf16.msra.mxu0 %v189
    %218 = vmatprep.subr.bf16.mxu0 0
    %219 = vmatpush1.bf16.msra.mxu0 %v188
    %220 = vmatprep.subr.bf16.mxu0 0
    %221 = vmatpush2.bf16.msra.mxu0 0
    %222 = vmatprep.subr.bf16.mxu0 0
    %223 = vmatpush2.bf16.msra.mxu0 0
    %224 = vmatprep.subr.bf16.mxu0 0
    %225 = vmatpush2.bf16.msra.mxu0 0
    %226 = vmatprep.subr.bf16.mxu0 0
    %227 = vmatpush2.bf16.msra.mxu0 0
    %228 = vmatprep.subr.bf16.mxu0 0
    %229 = vmatpush2.bf16.msra.mxu0 0
    %230 = vmatprep.subr.bf16.mxu0 0
    %231 = vmatpush2.bf16.msra.mxu0 0
    %232 = vmatprep.subr.bf16.mxu0 0
    %233 = vmatpush2.bf16.msra.mxu0 0
    %234 = vmatprep.subr.bf16.mxu0 0
    %235 = vmatpush2.bf16.msra.mxu0 0
    %236 = vmatprep.mubr.bf16.mxu0 0
    %237 = vmatmul.mubr.bf16.gmra.mxu0 %v139
    %v238 = vpop.f32.mrf.mxu0
    %v239 = vadd.f32 0.0, %v238
    %v240 = vpop.f32.mrf.mxu0
    %v241 = vpop.f32.mrf.mxu0
    %v242 = vpop.f32.mrf.mxu0
    %243 = vdwg.mxu0
    %v244 = vpack.c.bf16 %v239, %v239
    %v245 = vshrl.u32 %v43, 16
    %v246 = vpack.i.b16 %v245, %v245
    %v248 = vlaneseq
    %v249 = vshrl.u32 %v248, 7
    %v250 = vsub.s32 0, %v249
    %v251 = vrot.slane %v246, %v250
    %v252 = vadd.bf16 %v244, %v251
    %v253 = vmax.bf16 %v252, 0
    %v254 = vld [vmem:[#allocation2 + $0x90] sm:$0xff]
    %v255 = vld [vmem:[#allocation2 + $0x98] sm:$0xff]
    %v256 = vld [vmem:[#allocation2 + $0xa0] sm:$0xff]
    %v257 = vld [vmem:[#allocation2 + $0xa8] sm:$0xff]
    %v258 = vld [vmem:[#allocation2 + $0xb0] sm:$0xff]
    %v259 = vld [vmem:[#allocation2 + $0xb8] sm:$0xff]
    %v260 = vld [vmem:[#allocation2 + $0xc0] sm:$0xff]
    %v261 = vld [vmem:[#allocation2 + $0xc8] sm:$0xff]
    %v262 = vld [vmem:[#allocation2 + $0xd0] sm:$0xff]
    %v263 = vld [vmem:[#allocation2 + $0xd8] sm:$0xff]
    %v264 = vld [vmem:[#allocation2 + $0xe0] sm:$0xff]
    %v265 = vld [vmem:[#allocation2 + $0xe8] sm:$0xff]
    %v266 = vld [vmem:[#allocation2 + $0xf0] sm:$0xff]
    %v267 = vld [vmem:[#allocation2 + $0xf8] sm:$0xff]
    %v268 = vld [vmem:[#allocation2 + $0x100] sm:$0xff]
    %v269 = vld [vmem:[#allocation2 + $0x108] sm:$0xff]
    %v270 = vld [vmem:[#allocation2 + $0x290] sm:$0x22]
    %v287 = vunpack.c.l.b16 %v254
    %v288 = vunpack.c.h.b16 %v254
    %v289 = vunpack.c.l.b16 %v255
    %v290 = vunpack.c.h.b16 %v255
    %v291 = vunpack.c.l.b16 %v256
    %v292 = vunpack.c.h.b16 %v256
    %v293 = vunpack.c.l.b16 %v257
    %v294 = vunpack.c.h.b16 %v257
    %v295 = vunpack.c.l.b16 %v258
    %v296 = vunpack.c.h.b16 %v258
    %v297 = vunpack.c.l.b16 %v259
    %v298 = vunpack.c.h.b16 %v259
    %v299 = vunpack.c.l.b16 %v260
    %v300 = vunpack.c.h.b16 %v260
    %v301 = vunpack.c.l.b16 %v261
    %v302 = vunpack.c.h.b16 %v261
    %v303 = vunpack.c.l.b16 %v262
    %v304 = vunpack.c.h.b16 %v262
    %v305 = vunpack.c.l.b16 %v263
    %v306 = vunpack.c.h.b16 %v263
    %v307 = vunpack.c.l.b16 %v264
    %v308 = vunpack.c.h.b16 %v264
    %v309 = vunpack.c.l.b16 %v265
    %v310 = vunpack.c.h.b16 %v265
    %v311 = vunpack.c.l.b16 %v266
    %v312 = vunpack.c.h.b16 %v266
    %v313 = vunpack.c.l.b16 %v267
    %v314 = vunpack.c.h.b16 %v267
    %v315 = vunpack.c.l.b16 %v268
    %v316 = vunpack.c.h.b16 %v268
    %v317 = vunpack.c.l.b16 %v269
    %v318 = vunpack.c.h.b16 %v269
    %v319 = vpack.c.b16 %v289, %v287
    %v320 = vpack.c.b16 %v290, %v288
    %v321 = vpack.c.b16 %v293, %v291
    %v322 = vpack.c.b16 %v294, %v292
    %v323 = vpack.c.b16 %v297, %v295
    %v324 = vpack.c.b16 %v298, %v296
    %v325 = vpack.c.b16 %v301, %v299
    %v326 = vpack.c.b16 %v302, %v300
    %v327 = vpack.c.b16 %v305, %v303
    %v328 = vpack.c.b16 %v306, %v304
    %v329 = vpack.c.b16 %v309, %v307
    %v330 = vpack.c.b16 %v310, %v308
    %v331 = vpack.c.b16 %v313, %v311
    %v332 = vpack.c.b16 %v314, %v312
    %v333 = vpack.c.b16 %v317, %v315
    %v334 = vpack.c.b16 %v318, %v316
    %351 = vmatprep.subr.bf16.mxu0 %v334
    %352 = vmatpush1.bf16.msra.mxu0 %v333
    %353 = vmatprep.subr.bf16.mxu0 %v332
    %354 = vmatpush1.bf16.msra.mxu0 %v331
    %355 = vmatprep.subr.bf16.mxu0 %v330
    %356 = vmatpush1.bf16.msra.mxu0 %v329
    %357 = vmatprep.subr.bf16.mxu0 %v328
    %358 = vmatpush1.bf16.msra.mxu0 %v327
    %359 = vmatprep.subr.bf16.mxu0 %v326
    %360 = vmatpush1.bf16.msra.mxu0 %v325
    %361 = vmatprep.subr.bf16.mxu0 %v324
    %362 = vmatpush1.bf16.msra.mxu0 %v323
    %363 = vmatprep.subr.bf16.mxu0 %v322
    %364 = vmatpush1.bf16.msra.mxu0 %v321
    %365 = vmatprep.subr.bf16.mxu0 %v320
    %366 = vmatpush1.bf16.msra.mxu0 %v319
    %367 = vmatprep.subr.bf16.mxu0 0
    %368 = vmatpush2.bf16.msra.mxu0 0
    %369 = vmatprep.subr.bf16.mxu0 0
    %370 = vmatpush2.bf16.msra.mxu0 0
    %371 = vmatprep.subr.bf16.mxu0 0
    %372 = vmatpush2.bf16.msra.mxu0 0
    %373 = vmatprep.subr.bf16.mxu0 0
    %374 = vmatpush2.bf16.msra.mxu0 0
    %375 = vmatprep.subr.bf16.mxu0 0
    %376 = vmatpush2.bf16.msra.mxu0 0
    %377 = vmatprep.subr.bf16.mxu0 0
    %378 = vmatpush2.bf16.msra.mxu0 0
    %379 = vmatprep.subr.bf16.mxu0 0
    %380 = vmatpush2.bf16.msra.mxu0 0
    %381 = vmatprep.subr.bf16.mxu0 0
    %382 = vmatpush2.bf16.msra.mxu0 0
    %383 = vmatprep.mubr.bf16.mxu0 0
    %384 = vmatmul.mubr.bf16.gmra.mxu0 %v253
    %v385 = vpop.f32.mrf.mxu0
    %v386 = vadd.f32 0.0, %v385
    %v387 = vpop.f32.mrf.mxu0
    %v388 = vadd.f32 0.0, %v387
    %v389 = vpop.f32.mrf.mxu0
    %v390 = vpop.f32.mrf.mxu0
    %391 = vdwg.mxu0
    %v392 = vpack.c.bf16 %v386, %v386
    %v393 = vpack.c.bf16 %v388, %v388
    %v395 = vunpack.c.l.b16 %v270
    %v396 = vunpack.c.h.b16 %v270
    %v397 = vpack.c.b16 %v395, %v395
    %v398 = vpack.c.b16 %v396, %v396
    %v400 = vpack.i.b16 %v397, %v397
    %v402 = vlaneseq
    %v403 = vshrl.u32 %v402, 7
    %v404 = vsub.s32 1, %v403
    %v405 = vrot.slane %v400, %v404
    %v407 = vpack.i.b16 %v398, %v398
    %v409 = vlaneseq
    %v410 = vshrl.u32 %v409, 7
    %v411 = vsub.s32 1, %v410
    %v412 = vrot.slane %v407, %v411
    %v413 = vadd.bf16 %v392, %v405
    %v414 = vadd.bf16 %v393, %v412
    %v415 = vmax.bf16 %v413, 0
    %v416 = vmax.bf16 %v414, 0
    %v417 = vld [vmem:[#allocation2 + $0x110] sm:$0xf]
    %v418 = vld [vmem:[#allocation2 + $0x118] sm:$0xf]
    %v419 = vld [vmem:[#allocation2 + $0x120] sm:$0xf]
    %v420 = vld [vmem:[#allocation2 + $0x128] sm:$0xf]
    %v421 = vld [vmem:[#allocation2 + $0x130] sm:$0xf]
    %v422 = vld [vmem:[#allocation2 + $0x138] sm:$0xf]
    %v423 = vld [vmem:[#allocation2 + $0x140] sm:$0xf]
    %v424 = vld [vmem:[#allocation2 + $0x148] sm:$0xf]
    %v425 = vld [vmem:[#allocation2 + $0x150] sm:$0xf]
    %v426 = vld [vmem:[#allocation2 + $0x158] sm:$0xf]
    %v427 = vld [vmem:[#allocation2 + $0x160] sm:$0xf]
    %v428 = vld [vmem:[#allocation2 + $0x168] sm:$0xf]
    %v429 = vld [vmem:[#allocation2 + $0x170] sm:$0xf]
    %v430 = vld [vmem:[#allocation2 + $0x178] sm:$0xf]
    %v431 = vld [vmem:[#allocation2 + $0x180] sm:$0xf]
    %v432 = vld [vmem:[#allocation2 + $0x188] sm:$0xf]
    %v433 = vld [vmem:[#allocation2 + $0x190] sm:$0xf]
    %v434 = vld [vmem:[#allocation2 + $0x198] sm:$0xf]
    %v435 = vld [vmem:[#allocation2 + $0x1a0] sm:$0xf]
    %v436 = vld [vmem:[#allocation2 + $0x1a8] sm:$0xf]
    %v437 = vld [vmem:[#allocation2 + $0x1b0] sm:$0xf]
    %v438 = vld [vmem:[#allocation2 + $0x1b8] sm:$0xf]
    %v439 = vld [vmem:[#allocation2 + $0x1c0] sm:$0xf]
    %v440 = vld [vmem:[#allocation2 + $0x1c8] sm:$0xf]
    %v441 = vld [vmem:[#allocation2 + $0x1d0] sm:$0xf]
    %v442 = vld [vmem:[#allocation2 + $0x1d8] sm:$0xf]
    %v443 = vld [vmem:[#allocation2 + $0x1e0] sm:$0xf]
    %v444 = vld [vmem:[#allocation2 + $0x1e8] sm:$0xf]
    %v445 = vld [vmem:[#allocation2 + $0x1f0] sm:$0xf]
    %v446 = vld [vmem:[#allocation2 + $0x1f8] sm:$0xf]
    %v447 = vld [vmem:[#allocation2 + $0x200] sm:$0xf]
    %v448 = vld [vmem:[#allocation2 + $0x208] sm:$0xf]
    %v449 = vld [vmem:[#allocation2 + $0x290] sm:$0x2]
    %v482 = vunpack.c.l.b16 %v417
    %v483 = vunpack.c.l.b16 %v418
    %v484 = vunpack.c.l.b16 %v419
    %v485 = vunpack.c.l.b16 %v420
    %v486 = vunpack.c.l.b16 %v421
    %v487 = vunpack.c.l.b16 %v422
    %v488 = vunpack.c.l.b16 %v423
    %v489 = vunpack.c.l.b16 %v424
    %v490 = vunpack.c.l.b16 %v425
    %v491 = vunpack.c.l.b16 %v426
    %v492 = vunpack.c.l.b16 %v427
    %v493 = vunpack.c.l.b16 %v428
    %v494 = vunpack.c.l.b16 %v429
    %v495 = vunpack.c.l.b16 %v430
    %v496 = vunpack.c.l.b16 %v431
    %v497 = vunpack.c.l.b16 %v432
    %v498 = vunpack.c.l.b16 %v433
    %v499 = vunpack.c.l.b16 %v434
    %v500 = vunpack.c.l.b16 %v435
    %v501 = vunpack.c.l.b16 %v436
    %v502 = vunpack.c.l.b16 %v437
    %v503 = vunpack.c.l.b16 %v438
    %v504 = vunpack.c.l.b16 %v439
    %v505 = vunpack.c.l.b16 %v440
    %v506 = vunpack.c.l.b16 %v441
    %v507 = vunpack.c.l.b16 %v442
    %v508 = vunpack.c.l.b16 %v443
    %v509 = vunpack.c.l.b16 %v444
    %v510 = vunpack.c.l.b16 %v445
    %v511 = vunpack.c.l.b16 %v446
    %v512 = vunpack.c.l.b16 %v447
    %v513 = vunpack.c.l.b16 %v448
    %v514 = vpack.c.b16 %v483, %v482
    %v515 = vpack.c.b16 %v485, %v484
    %v516 = vpack.c.b16 %v487, %v486
    %v517 = vpack.c.b16 %v489, %v488
    %v518 = vpack.c.b16 %v491, %v490
    %v519 = vpack.c.b16 %v493, %v492
    %v520 = vpack.c.b16 %v495, %v494
    %v521 = vpack.c.b16 %v497, %v496
    %v522 = vpack.c.b16 %v499, %v498
    %v523 = vpack.c.b16 %v501, %v500
    %v524 = vpack.c.b16 %v503, %v502
    %v525 = vpack.c.b16 %v505, %v504
    %v526 = vpack.c.b16 %v507, %v506
    %v527 = vpack.c.b16 %v509, %v508
    %v528 = vpack.c.b16 %v511, %v510
    %v529 = vpack.c.b16 %v513, %v512
    %546 = vmatprep.subr.bf16.mxu0 0
    %547 = vmatpush1.bf16.msra.mxu0 %v521
    %548 = vmatprep.subr.bf16.mxu0 0
    %549 = vmatpush1.bf16.msra.mxu0 %v520
    %550 = vmatprep.subr.bf16.mxu0 0
    %551 = vmatpush1.bf16.msra.mxu0 %v519
    %552 = vmatprep.subr.bf16.mxu0 0
    %553 = vmatpush1.bf16.msra.mxu0 %v518
    %554 = vmatprep.subr.bf16.mxu0 0
    %555 = vmatpush1.bf16.msra.mxu0 %v517
    %556 = vmatprep.subr.bf16.mxu0 0
    %557 = vmatpush1.bf16.msra.mxu0 %v516
    %558 = vmatprep.subr.bf16.mxu0 0
    %559 = vmatpush1.bf16.msra.mxu0 %v515
    %560 = vmatprep.subr.bf16.mxu0 0
    %561 = vmatpush1.bf16.msra.mxu0 %v514
    %562 = vmatprep.subr.bf16.mxu0 0
    %563 = vmatpush2.bf16.msra.mxu0 %v529
    %564 = vmatprep.subr.bf16.mxu0 0
    %565 = vmatpush2.bf16.msra.mxu0 %v528
    %566 = vmatprep.subr.bf16.mxu0 0
    %567 = vmatpush2.bf16.msra.mxu0 %v527
    %568 = vmatprep.subr.bf16.mxu0 0
    %569 = vmatpush2.bf16.msra.mxu0 %v526
    %570 = vmatprep.subr.bf16.mxu0 0
    %571 = vmatpush2.bf16.msra.mxu0 %v525
    %572 = vmatprep.subr.bf16.mxu0 0
    %573 = vmatpush2.bf16.msra.mxu0 %v524
    %574 = vmatprep.subr.bf16.mxu0 0
    %575 = vmatpush2.bf16.msra.mxu0 %v523
    %576 = vmatprep.subr.bf16.mxu0 0
    %577 = vmatpush2.bf16.msra.mxu0 %v522
    %578 = vmatprep.mubr.bf16.mxu0 %v416
    %579 = vmatmul.mubr.bf16.gmra.mxu0 %v415
    %v580 = vpop.f32.mrf.mxu0
    %v581 = vadd.f32 0.0, %v580
    %v582 = vpop.f32.mrf.mxu0
    %v583 = vpop.f32.mrf.mxu0
    %v584 = vpop.f32.mrf.mxu0
    %585 = vdwg.mxu0
    %v586 = vpack.c.bf16 %v581, %v581
    %v588 = vshrl.u32 %v449, 16
    %v589 = vpack.i.b16 %v588, %v588
    %v591 = vlaneseq
    %v592 = vshrl.u32 %v591, 7
    %v593 = vsub.s32 1, %v592
    %v594 = vrot.slane %v589, %v593
    %v595 = vadd.bf16 %v586, %v594
    %v596 = vmax.bf16 %v595, 0
    %v597 = vld [vmem:[#allocation2 + $0x210] sm:$0xf]
    %v598 = vld [vmem:[#allocation2 + $0x218] sm:$0xf]
    %v599 = vld [vmem:[#allocation2 + $0x220] sm:$0xf]
    %v600 = vld [vmem:[#allocation2 + $0x228] sm:$0xf]
    %v601 = vld [vmem:[#allocation2 + $0x230] sm:$0xf]
    %v602 = vld [vmem:[#allocation2 + $0x238] sm:$0xf]
    %v603 = vld [vmem:[#allocation2 + $0x240] sm:$0xf]
    %v604 = vld [vmem:[#allocation2 + $0x248] sm:$0xf]
    %v605 = vld [vmem:[#allocation2 + $0x250] sm:$0xf]
    %v606 = vld [vmem:[#allocation2 + $0x258] sm:$0xf]
    %v607 = vld [vmem:[#allocation2 + $0x260] sm:$0xf]
    %v608 = vld [vmem:[#allocation2 + $0x268] sm:$0xf]
    %v609 = vld [vmem:[#allocation2 + $0x270] sm:$0xf]
    %v610 = vld [vmem:[#allocation2 + $0x278] sm:$0xf]
    %v611 = vld [vmem:[#allocation2 + $0x280] sm:$0xf]
    %v612 = vld [vmem:[#allocation2 + $0x288] sm:$0xf]
    %v613 = vld [vmem:[#allocation2 + $0x290] sm:$0x4]
    %v614 = vunpack.c.l.bf16 %v613
    %v615 = vlaneseq
    %v616 = vshrl.u32 %v615, 7
    %v617 = vsub.s32 4, %v616
    %v618 = vrot.slane %v614, %v617
    %v635 = vunpack.c.l.b16 %v597
    %v636 = vunpack.c.l.b16 %v598
    %v637 = vunpack.c.l.b16 %v599
    %v638 = vunpack.c.l.b16 %v600
    %v639 = vunpack.c.l.b16 %v601
    %v640 = vunpack.c.l.b16 %v602
    %v641 = vunpack.c.l.b16 %v603
    %v642 = vunpack.c.l.b16 %v604
    %v643 = vunpack.c.l.b16 %v605
    %v644 = vunpack.c.l.b16 %v606
    %v645 = vunpack.c.l.b16 %v607
    %v646 = vunpack.c.l.b16 %v608
    %v647 = vunpack.c.l.b16 %v609
    %v648 = vunpack.c.l.b16 %v610
    %v649 = vunpack.c.l.b16 %v611
    %v650 = vunpack.c.l.b16 %v612
    %v651 = vpack.c.b16 %v636, %v635
    %v652 = vpack.c.b16 %v638, %v637
    %v653 = vpack.c.b16 %v640, %v639
    %v654 = vpack.c.b16 %v642, %v641
    %v655 = vpack.c.b16 %v644, %v643
    %v656 = vpack.c.b16 %v646, %v645
    %v657 = vpack.c.b16 %v648, %v647
    %v658 = vpack.c.b16 %v650, %v649
    %667 = vmatprep.subr.bf16.mxu0 0
    %668 = vmatpush1.bf16.msra.mxu0 %v658
    %669 = vmatprep.subr.bf16.mxu0 0
    %670 = vmatpush1.bf16.msra.mxu0 %v657
    %671 = vmatprep.subr.bf16.mxu0 0
    %672 = vmatpush1.bf16.msra.mxu0 %v656
    %673 = vmatprep.subr.bf16.mxu0 0
    %674 = vmatpush1.bf16.msra.mxu0 %v655
    %675 = vmatprep.subr.bf16.mxu0 0
    %676 = vmatpush1.bf16.msra.mxu0 %v654
    %677 = vmatprep.subr.bf16.mxu0 0
    %678 = vmatpush1.bf16.msra.mxu0 %v653
    %679 = vmatprep.subr.bf16.mxu0 0
    %680 = vmatpush1.bf16.msra.mxu0 %v652
    %681 = vmatprep.subr.bf16.mxu0 0
    %682 = vmatpush1.bf16.msra.mxu0 %v651
    %683 = vmatprep.subr.bf16.mxu0 0
    %684 = vmatpush2.bf16.msra.mxu0 0
    %685 = vmatprep.subr.bf16.mxu0 0
    %686 = vmatpush2.bf16.msra.mxu0 0
    %687 = vmatprep.subr.bf16.mxu0 0
    %688 = vmatpush2.bf16.msra.mxu0 0
    %689 = vmatprep.subr.bf16.mxu0 0
    %690 = vmatpush2.bf16.msra.mxu0 0
    %691 = vmatprep.subr.bf16.mxu0 0
    %692 = vmatpush2.bf16.msra.mxu0 0
    %693 = vmatprep.subr.bf16.mxu0 0
    %694 = vmatpush2.bf16.msra.mxu0 0
    %695 = vmatprep.subr.bf16.mxu0 0
    %696 = vmatpush2.bf16.msra.mxu0 0
    %697 = vmatprep.subr.bf16.mxu0 0
    %698 = vmatpush2.bf16.msra.mxu0 0
    %699 = vmatprep.mubr.bf16.mxu0 0
    %700 = vmatmul.mubr.bf16.gmra.mxu0 %v596
    %v701 = vpop.f32.mrf.mxu0
    %v702 = vadd.f32 %v618, %v701
    %v703 = vpop.f32.mrf.mxu0
    %v704 = vpop.f32.mrf.mxu0
    %v705 = vpop.f32.mrf.mxu0
    %706 = vdwg.mxu0
    %707 = vst.msk [vmem:[%s2] sm:$0xff] %vm82, %v702
    // Predicated region
    $region14: #{tpu_custom_call.1} parent=1 // pred_check
      _
    $region15: #{tpu_custom_call.1} parent=1 // pred_check_branch
      %709 = sbr.rel (0) target = $region17
    $region16: #{tpu_custom_call.1} parent=1 // pred_region
      _
    $region17: #{tpu_custom_call.1} parent=1 // pred_fallthru
      _
    // Predicated region
    $region18: #{tpu_custom_call.1} parent=1 // pred_check
      _
    $region19: #{tpu_custom_call.1} parent=1 // pred_check_branch
      %711 = sbr.rel (0) target = $region21
    $region20: #{tpu_custom_call.1} parent=1 // pred_region
      _
    $region21: #{tpu_custom_call.1} parent=1 // pred_fallthru
      _
    %712 = vsyncpa [#allocation3], 1

</llo_original>
